<compile_context>
chip_gen: v5e
topology: v5e:2x2
jax: 0.10.0
libtpu: 0.0.40
codegen_flags: <defaults>
</compile_context>

<pallas_src>
import functools
import math

import numpy as np

import jax
import jax.numpy as jnp
from jax import lax
from jax.experimental import pallas as pl
from jax.experimental.pallas import tpu as pltpu


_LANE = 128
_FUSED_WEIGHT_MAX_BYTES = 4 * 1024 * 1024


def _round_up(x: int, m: int) -> int:
    return (x + m - 1) // m * m


def _sublane(itemsize: int) -> int:
    # sublane packing granularity: f32 -> 8, bf16 -> 16, int8/fp8 -> 32
    return max(8, 32 // max(itemsize, 1))


@functools.lru_cache(maxsize=None)
def _tpu_config():
    """Generation-aware VMEM / TensorCore-count / roofline parameters."""
    kind = ""
    try:
        kind = jax.devices()[0].device_kind.lower()
    except Exception:
        pass
    vmem = None
    try:
        vmem = int(pltpu.get_tpu_info().vmem_capacity_bytes)
    except Exception:
        vmem = None
    if "7" in kind:                                    # v7x: 64 MiB / TC, 2 TCs
        vmem, two_tc, f32_ridge = vmem or (64 << 20), True, 64.0
    elif "v6" in kind:                                 # v6e: 128 MiB, 1 TC
        vmem, two_tc, f32_ridge = vmem or (128 << 20), False, 128.0
    elif "v5p" in kind:                                # v5p: 128 MiB, 2 TCs
        vmem, two_tc, f32_ridge = vmem or (128 << 20), True, 96.0
    elif "v5" in kind:                                 # v5e: 128 MiB, 1 TC, weak f32 MXU
        vmem, two_tc, f32_ridge = vmem or (128 << 20), False, 48.0
    else:                                              # unknown -> conservative (v7x-like)
        vmem, two_tc, f32_ridge = vmem or (64 << 20), True, 48.0
    vmem_limit = min(vmem * 3 // 4, vmem - (8 << 20))
    return dict(
        vmem_limit=int(vmem_limit),
        block_budget=int(vmem_limit // 2),   # double-buffered data blocks
        two_tc=bool(two_tc),
        f32_ridge=float(f32_ridge),
    )


def _interp_matrix_np(out_size: int, in_size: int, scale: float) -> np.ndarray:
    """Bilinear interpolation matrix, PyTorch align_corners=False semantics.

    Built with numpy at trace time -> baked into the jaxpr as a constant.
    """
    o = np.arange(out_size, dtype=np.float64)
    src = np.maximum((o + 0.5) / scale - 0.5, 0.0)
    i0 = np.minimum(np.floor(src).astype(np.int64), in_size - 1)
    i1 = np.minimum(i0 + 1, in_size - 1)
    w1 = src - i0.astype(np.float64)
    w0 = 1.0 - w1
    m = np.zeros((out_size, in_size), dtype=np.float64)
    rows = np.arange(out_size)
    np.add.at(m, (rows, i0), w0)
    np.add.at(m, (rows, i1), w1)
    return m.astype(np.float32)


def _pick_tn(n, per_tn_bytes, budget_bytes, *, multiple=1, prefer_multi_step=False):
    """Largest legal divisor tn of n whose block fits the VMEM budget.

    Legal: tn == n (full-dim block) or tn % multiple == 0 (block alignment).
    Returns None if no legal divisor fits (caller decides the fallback).
    On 2-TensorCore chips, prefers an even (>= 2) number of grid steps.
    """
    cap = budget_bytes // max(per_tn_bytes, 1)
    if cap < 1:
        return None
    divs = [d for d in range(1, n + 1) if n % d == 0]
    ok = [d for d in divs if d == n or multiple == 1 or d % multiple == 0]
    fits = [d for d in ok if d <= cap]
    if not fits:
        return None
    tn = max(fits)
    if prefer_multi_step and n > 1:
        even = [d for d in fits if (n // d) % 2 == 0]
        if even:
            tn = max(even)
        elif tn == n and len(fits) > 1:
            tn = sorted(fits)[-2]     # at least make the grid multi-step
    return tn


def _unroll_factor(tn: int):
    if tn <= 8:
        return True
    for u in (8, 4, 2):
        if tn % u == 0:
            return u
    return 1


def _fused_upsample_kernel(x_ref, m_ref, o_ref):
    """Whole 2-D bilinear resize of TN planes as ONE lane-dense MXU matmul.

    x_ref: (TN, H*W)     flattened input planes   (lane dim = H*W)
    m_ref: (H*W, OH*OW)  kron(Wh, Ww)^T weight (constant block, fetched once)
    o_ref: (TN, OH*OW)   flattened output planes  (lane dim = OH*OW)
    """
    o_ref[...] = jnp.dot(
        x_ref[...], m_ref[...], preferred_element_type=jnp.float32
    ).astype(o_ref.dtype)


def _separable_upsample_kernel(x_ref, wh_ref, wwt_ref, o_ref, t_ref):
    """Separable path: stage-1 batched over all planes, stage-2 unrolled.

    x_ref  : (TN*H, W)   rows of all planes in this block
    wh_ref : (OH, H)     row-interpolation matrix
    wwt_ref: (W, OW)     column-interpolation matrix, pre-transposed in wrapper
    o_ref  : (TN*OH, OW) rows of all output planes in this block
    t_ref  : (TN*H, OW)  f32 VMEM scratch (stage-1 result)
    """
    OH, H = wh_ref.shape
    tn = x_ref.shape[0] // H

    # Stage 1 (column interp): one big MXU matmul over every row of every
    # plane in the block; f32 accumulate into scratch.
    t_ref[...] = jnp.dot(
        x_ref[...], wwt_ref[...], preferred_element_type=jnp.float32
    )

    # Stage 2 (row interp): weight hoisted + cast to f32 once; the f32
    # intermediate feeds the second dot directly (no low-precision round-trip).
    wh = wh_ref[...].astype(jnp.float32)

    def body(n, carry):
        t_start = pl.multiple_of(n * H, 8) if H % 8 == 0 else n * H
        t = t_ref[pl.ds(t_start, H), :]                       # (H, OW) f32
        out = jnp.dot(wh, t, preferred_element_type=jnp.float32)   # (OH, OW)
        o_start = pl.multiple_of(n * OH, 8) if OH % 8 == 0 else n * OH
        o_ref[pl.ds(o_start, OH), :] = out.astype(o_ref.dtype)
        return carry

    lax.fori_loop(0, tn, body, 0, unroll=_unroll_factor(tn))


@functools.partial(jax.jit, static_argnames=("scale_factor",))
def upsample_block(x: jnp.ndarray, scale_factor=(2, 2)) -> jnp.ndarray:
    """UpSampleBlock forward: bilinear (align_corners=False) upsample of NCHW."""
    B, C, H, W = x.shape
    sh, sw = scale_factor
    OH, OW = int(H * sh), int(W * sw)
    N = B * C
    dtype = x.dtype
    itemsize = jnp.dtype(dtype).itemsize
    sub = _sublane(itemsize)
    cfg = _tpu_config()

    # Host-built (numpy) interpolation matrices -> jaxpr constants.
    wh_np = _interp_matrix_np(OH, H, float(sh))    # (OH, H)
    ww_np = _interp_matrix_np(OW, W, float(sw))    # (OW, W)

    compiler_params = pltpu.CompilerParams(
        dimension_semantics=("parallel",),
        vmem_limit_bytes=cfg["vmem_limit"],
    )

    # ---------------- path choice: fused kron matmul vs separable ----------------
    hw_pad = _round_up(H * W, _LANE)
    ohow_pad = _round_up(OH * OW, _LANE)
    fused_weight_bytes = H * W * OH * OW * itemsize
    fused_weight_vmem = 2 * itemsize * _round_up(H * W, sub) * ohow_pad
    # flop/byte of the fused matmul vs a conservative per-generation f32 MXU
    # ridge (sub-32-bit dtypes get ~4x more MXU headroom per HBM byte).
    intensity = 2.0 * H * W * OH * OW / ((H * W + OH * OW) * itemsize)
    ridge = cfg["f32_ridge"] * (1.0 if itemsize >= 4 else 4.0)
    # When min(H, W) < 32 the separable matmuls have contraction depth < 32
    # (< 25% MXU fill) and are even more compute-starved than the fused kron
    # matmul (K = H*W >= 256 fills the MXU), so fused stays preferable even
    # above the roofline ridge (e.g. 16x16 f32 on v5e/v7x).
    fused_roofline_ok = (intensity <= ridge) or (min(H, W) < 32)

    fused_tn = None
    if fused_weight_bytes <= _FUSED_WEIGHT_MAX_BYTES and fused_roofline_ok:
        per_tn = 2 * itemsize * (hw_pad + ohow_pad)   # double-buffered in + out
        budget = cfg["block_budget"] - fused_weight_vmem
        if budget >= per_tn:
            fused_tn = _pick_tn(N, per_tn, budget, multiple=sub,
                                prefer_multi_step=cfg["two_tc"])

    if fused_tn is not None:
        tn = fused_tn
        # M[h*W + w, oh*OW + ow] = Wh[oh, h] * Ww[ow, w]  (exact for 2x bilinear)
        m_np = np.einsum("oh,pw->hwop", wh_np, ww_np).reshape(H * W, OH * OW)
        m = jnp.asarray(m_np, dtype=dtype)
        x_flat = x.reshape(N, H * W)
        out_flat = pl.pallas_call(
            _fused_upsample_kernel,
            out_shape=jax.ShapeDtypeStruct((N, OH * OW), dtype),
            grid_spec=pltpu.PrefetchScalarGridSpec(
                num_scalar_prefetch=0,
                grid=(N // tn,),
                in_specs=[
                    pl.BlockSpec((tn, H * W), lambda i: (i, 0)),
                    pl.BlockSpec((H * W, OH * OW), lambda i: (0, 0)),
                ],
                out_specs=pl.BlockSpec((tn, OH * OW), lambda i: (i, 0)),
            ),
            compiler_params=compiler_params,
        )(x_flat, m)
        return out_flat.reshape(B, C, OH, OW)

    # ---------------- separable path (larger planes) ----------------
    wh = jnp.asarray(wh_np, dtype=dtype)                  # (OH, H)
    wwt = jnp.asarray(np.ascontiguousarray(ww_np.T), dtype=dtype)   # (W, OW)

    # Real (lane/sublane padded) VMEM footprint per plane.
    w_pad, ow_pad = _round_up(W, _LANE), _round_up(OW, _LANE)
    h_pad, oh_pad = _round_up(H, sub), _round_up(OH, sub)
    per_tn = (2 * itemsize * h_pad * w_pad        # x block, double-buffered
              + 2 * itemsize * oh_pad * ow_pad    # out block, double-buffered
              + 4 * h_pad * ow_pad)               # f32 stage-1 scratch (single)
    weight_vmem = 2 * itemsize * (_round_up(OH, sub) * _round_up(H, _LANE)
                                  + _round_up(W, sub) * ow_pad)
    budget = max(cfg["block_budget"] - weight_vmem, 0)

    # Block second-minor dims are tn*H / tn*OH -> require sublane alignment
    # (or tn == N, handled inside _pick_tn via the full-dim exemption).
    multiple = math.lcm(sub // math.gcd(H, sub), sub // math.gcd(OH, sub))
    tn = _pick_tn(N, per_tn, budget, multiple=multiple,
                  prefer_multi_step=cfg["two_tc"])
    if tn is None:
        # Nothing fits the budget: take the smallest legal block and rely on
        # the explicit vmem_limit headroom.
        # TODO(synk): tile within a plane for very large feature maps.
        legal = [d for d in range(1, N + 1)
                 if N % d == 0 and (d == N or d % multiple == 0)]
        tn = min(legal)

    x2 = x.reshape(N * H, W)
    out2 = pl.pallas_call(
        _separable_upsample_kernel,
        out_shape=jax.ShapeDtypeStruct((N * OH, OW), dtype),
        grid_spec=pltpu.PrefetchScalarGridSpec(
            num_scalar_prefetch=0,
            grid=(N // tn,),
            in_specs=[
                pl.BlockSpec((tn * H, W), lambda i: (i, 0)),
                pl.BlockSpec((OH, H), lambda i: (0, 0)),
                pl.BlockSpec((W, OW), lambda i: (0, 0)),
            ],
            out_specs=pl.BlockSpec((tn * OH, OW), lambda i: (i, 0)),
            scratch_shapes=[pltpu.VMEM((tn * H, OW), jnp.float32)],
        ),
        compiler_params=compiler_params,
    )(x2, wh, wwt)
    return out2.reshape(B, C, OH, OW)


def _reference_upsample(x: jnp.ndarray, scale_factor=(2, 2)) -> jnp.ndarray:
    """Pure-JAX gather-based reference (PyTorch bilinear, align_corners=False)."""
    B, C, H, W = x.shape
    sh, sw = scale_factor
    OH, OW = int(H * sh), int(W * sw)

    def coords(out_size, in_size, scale):
        o = jnp.arange(out_size, dtype=jnp.float32)
        src = jnp.clip((o + 0.5) / scale - 0.5, 0.0, None)
        i0 = jnp.minimum(jnp.floor(src).astype(jnp.int32), in_size - 1)
        i1 = jnp.minimum(i0 + 1, in_size - 1)
        w1 = src - i0.astype(jnp.float32)
        return i0, i1, w1

    y0, y1, wy = coords(OH, H, float(sh))
    x0, x1, wx = coords(OW, W, float(sw))
    wy = wy[:, None]
    wx = wx[None, :]

    g = lambda yi, xi: x[:, :, yi, :][:, :, :, xi]
    top = g(y0, x0) * (1 - wx) + g(y0, x1) * wx
    bot = g(y1, x0) * (1 - wx) + g(y1, x1) * wx
    return top * (1 - wy) + bot * wy


if __name__ == "__main__":
    key = jax.random.PRNGKey(0)
    k1, k2 = jax.random.split(key, 2)

    # Small feature maps (the module's typical regime) -> fused kron-matmul path.
    x = jax.random.normal(k1, (2, 4, 16, 16), dtype=jnp.float32)
    out = jax.block_until_ready(upsample_block(x, scale_factor=(2, 2)))
    assert out.shape == (2, 4, 32, 32), out.shape
    err = float(jnp.max(jnp.abs(out - _reference_upsample(x))))
    assert err < 1e-5, f"fused path max abs err {err}"

    # Larger planes -> separable path (batched stage-1 + unrolled stage-2).
    x_big = jax.random.normal(k2, (1, 8, 32, 32), dtype=jnp.float32)
    out_big = jax.block_until_ready(upsample_block(x_big, scale_factor=(2, 2)))
    assert out_big.shape == (1, 8, 64, 64), out_big.shape
    err_big = float(jnp.max(jnp.abs(out_big - _reference_upsample(x_big))))
    assert err_big < 1e-5, f"separable path max abs err {err_big}"

    # bf16 inputs (2x bilinear coefficients are exact in bf16).
    x_bf = x.astype(jnp.bfloat16)
    out_bf = jax.block_until_ready(upsample_block(x_bf, scale_factor=(2, 2)))
    ref_bf = _reference_upsample(x_bf.astype(jnp.float32))
    err_bf = float(jnp.max(jnp.abs(out_bf.astype(jnp.float32) - ref_bf)))
    assert err_bf < 6e-2, f"bf16 path max abs err {err_bf}"

    print("KERNEL_OK")
</pallas_src>

<mosaic_0001>
module attributes {stable_mosaic.version = 11 : i64} {
  func.func @_fused_upsample_kernel(%arg0: i32, %arg1: memref<8x256xf32, #tpu.memory_space<vmem>>, %arg2: memref<256x1024xf32, #tpu.memory_space<vmem>>, %arg3: memref<8x1024xf32, #tpu.memory_space<vmem>>) attributes {dimension_semantics = [#tpu.dimension_semantics<parallel>], iteration_bounds = array<i64: 1>, scalar_prefetch = 0 : i64, scratch_operands = 0 : i64, tpu.core_type = #tpu.core_type<tc>, window_params = [{transform_indices = @transform_0, window_bounds = array<i64: 8, 256>}, {pipeline_mode = #tpu.pipeline_mode<synchronous>, transform_indices = @transform_1, window_bounds = array<i64: 256, 1024>}, {transform_indices = @transform_2, window_bounds = array<i64: 8, 1024>}]} {
    %c0 = arith.constant 0 : index
    %c0_0 = arith.constant 0 : index
    %0 = vector.load %arg1[%c0, %c0_0] : memref<8x256xf32, #tpu.memory_space<vmem>>, vector<8x256xf32>
    %c0_1 = arith.constant 0 : index
    %c0_2 = arith.constant 0 : index
    %1 = vector.load %arg2[%c0_1, %c0_2] : memref<256x1024xf32, #tpu.memory_space<vmem>>, vector<256x1024xf32>
    %cst = arith.constant dense<0.000000e+00> : vector<8x1024xf32>
    %2 = tpu.matmul %0, %1, %cst {dimension_numbers = #tpu.dot_dimension_numbers<[1], [0], [0], [1], [0, 0, 1, 1], [], []>} : vector<8x256xf32>, vector<256x1024xf32>, vector<8x1024xf32> -> vector<8x1024xf32>
    %c0_3 = arith.constant 0 : index
    %c0_4 = arith.constant 0 : index
    %3 = vector.load %arg3[%c0_3, %c0_4] : memref<8x1024xf32, #tpu.memory_space<vmem>>, vector<8x1024xf32>
    tpu.vector_store %arg3[%c0_3, %c0_4], %2 {strides = array<i32>} : memref<8x1024xf32, #tpu.memory_space<vmem>>, vector<8x1024xf32>,
    return
  }
  func.func @transform_0(%arg0: i32) -> (i32, i32) {
    %c0_i32 = arith.constant 0 : i32
    %c0_i32_0 = arith.constant 0 : i32
    return %arg0, %c0_i32 : i32, i32
  }
  func.func @transform_1(%arg0: i32) -> (i32, i32) {
    %c0_i32 = arith.constant 0 : i32
    %c0_i32_0 = arith.constant 0 : i32
    %c0_i32_1 = arith.constant 0 : i32
    return %c0_i32, %c0_i32_0 : i32, i32
  }
  func.func @transform_2(%arg0: i32) -> (i32, i32) {
    %c0_i32 = arith.constant 0 : i32
    %c0_i32_0 = arith.constant 0 : i32
    return %arg0, %c0_i32 : i32, i32
  }
}

</mosaic_0001>

<llo_original>
// kernel: upsample_block.1
$region0: #{upsample_block.1}
  #allocation0 [shape = 'u32[]', space=smem, size = 0x4, offset = 0x4, fixed_abs, tag = 'smem constant byte address 0x4 - core index']
  #allocation1 [shape = 'u32[72,128]{1,0:T(1,128)}', space=vmem, size = 0x9000, scoped, tag = 'internal scratch']
  %s0 = inlined_call_operand.vmem [shape: f32[8,256], index: 0, kind: input, shape index: {}]
  %s1 = inlined_call_operand.hbm [shape: f32[256,1024], index: 1, kind: input, shape index: {}]
  %s2 = inlined_call_operand.vmem [shape: f32[8,1024], index: 2, kind: output, shape index: {}]
  %s3 = sld [smem:[#allocation0]]
  $region22: #{upsample_block.1} parent=0
    _
  %s5 = ssub.s32 1, %s3
  %s6 = scalar_select 0, %s5, %s3
  $region1: #{upsample_block.1} parent=0
    #allocation2 [shape = 'u8[1048576]{0}', space=vmem, size = 0x100000, scoped, tag = 'input window, operand 1, single buffered']
    #allocation3 [shape = 's32[1]{0}', space=sflag, size = 0x4, scoped, tag = 'scoped memory for upsample_block.1']
    %7 = vsyncpa [#allocation3], 0
    // Predicated region
    $region2: #{upsample_block.1} parent=1 // pred_check
      _
    $region3: #{upsample_block.1} parent=1 // pred_check_branch
      %9 = sbr.rel (0) target = $region5
    $region4: #{upsample_block.1} parent=1 // pred_region
      _
    $region5: #{upsample_block.1} parent=1 // pred_fallthru
      _
    // Predicated region
    $region6: #{upsample_block.1} parent=1 // pred_check
      _
    $region7: #{upsample_block.1} parent=1 // pred_check_branch
      %11 = sbr.rel (0) target = $region9
    $region8: #{upsample_block.1} parent=1 // pred_region
      %13 = vsyncadd [#allocation3], 0
      %s14 = sshll.u32 %s1, 4
      %s15 = int_to_ptr.hbm [resolvable:$true] %s14
      %s16 = sshll.u32 [#allocation2], 4
      %s17 = int_to_ptr.vmem [resolvable:$true] %s16
      %22 = dma.hbm_to_vmem [thread:$0]  %s15, 32768, %s17, [#allocation3], 1024, 1024, 64
    $region9: #{upsample_block.1} parent=1 // pred_fallthru
      _
    // Predicated region
    $region10: #{upsample_block.1} parent=1 // pred_check
      _
    $region11: #{upsample_block.1} parent=1 // pred_check_branch
      %24 = sbr.rel (0) target = $region13
    $region12: #{upsample_block.1} parent=1 // pred_region
      %26 = dma.done [#allocation3], 32768
    $region13: #{upsample_block.1} parent=1 // pred_fallthru
      _
    %v27 = vld [vmem:[%s0] sm:$0xff]
    %v28 = vld [vmem:[%s0 + $0x8] sm:$0xff]
    %v29 = vld [vmem:[#allocation2] sm:$0xff]
    %v30 = vld [vmem:[#allocation2 + $0x8] sm:$0xff]
    %v31 = vld [vmem:[#allocation2 + $0x10] sm:$0xff]
    %v32 = vld [vmem:[#allocation2 + $0x18] sm:$0xff]
    %v33 = vld [vmem:[#allocation2 + $0x20] sm:$0xff]
    %v34 = vld [vmem:[#allocation2 + $0x28] sm:$0xff]
    %v35 = vld [vmem:[#allocation2 + $0x30] sm:$0xff]
    %v36 = vld [vmem:[#allocation2 + $0x38] sm:$0xff]
    %v37 = vld [vmem:[#allocation2 + $0x40] sm:$0xff]
    %v38 = vld [vmem:[#allocation2 + $0x48] sm:$0xff]
    %v39 = vld [vmem:[#allocation2 + $0x50] sm:$0xff]
    %v40 = vld [vmem:[#allocation2 + $0x58] sm:$0xff]
    %v41 = vld [vmem:[#allocation2 + $0x60] sm:$0xff]
    %v42 = vld [vmem:[#allocation2 + $0x68] sm:$0xff]
    %v43 = vld [vmem:[#allocation2 + $0x70] sm:$0xff]
    %v44 = vld [vmem:[#allocation2 + $0x78] sm:$0xff]
    %v45 = vld [vmem:[#allocation2 + $0x80] sm:$0xff]
    %v46 = vld [vmem:[#allocation2 + $0x88] sm:$0xff]
    %v47 = vld [vmem:[#allocation2 + $0x90] sm:$0xff]
    %v48 = vld [vmem:[#allocation2 + $0x98] sm:$0xff]
    %v49 = vld [vmem:[#allocation2 + $0xa0] sm:$0xff]
    %v50 = vld [vmem:[#allocation2 + $0xa8] sm:$0xff]
    %v51 = vld [vmem:[#allocation2 + $0xb0] sm:$0xff]
    %v52 = vld [vmem:[#allocation2 + $0xb8] sm:$0xff]
    %v53 = vld [vmem:[#allocation2 + $0xc0] sm:$0xff]
    %v54 = vld [vmem:[#allocation2 + $0xc8] sm:$0xff]
    %v55 = vld [vmem:[#allocation2 + $0xd0] sm:$0xff]
    %v56 = vld [vmem:[#allocation2 + $0xd8] sm:$0xff]
    %v57 = vld [vmem:[#allocation2 + $0xe0] sm:$0xff]
    %v58 = vld [vmem:[#allocation2 + $0xe8] sm:$0xff]
    %v59 = vld [vmem:[#allocation2 + $0xf0] sm:$0xff]
    %v60 = vld [vmem:[#allocation2 + $0xf8] sm:$0xff]
    %v61 = vld [vmem:[#allocation2 + $0x100] sm:$0xff]
    %v62 = vld [vmem:[#allocation2 + $0x108] sm:$0xff]
    %v63 = vld [vmem:[#allocation2 + $0x110] sm:$0xff]
    %v64 = vld [vmem:[#allocation2 + $0x118] sm:$0xff]
    %v65 = vld [vmem:[#allocation2 + $0x120] sm:$0xff]
    %v66 = vld [vmem:[#allocation2 + $0x128] sm:$0xff]
    %v67 = vld [vmem:[#allocation2 + $0x130] sm:$0xff]
    %v68 = vld [vmem:[#allocation2 + $0x138] sm:$0xff]
    %v69 = vld [vmem:[#allocation2 + $0x140] sm:$0xff]
    %v70 = vld [vmem:[#allocation2 + $0x148] sm:$0xff]
    %v71 = vld [vmem:[#allocation2 + $0x150] sm:$0xff]
    %v72 = vld [vmem:[#allocation2 + $0x158] sm:$0xff]
    %v73 = vld [vmem:[#allocation2 + $0x160] sm:$0xff]
    %v74 = vld [vmem:[#allocation2 + $0x168] sm:$0xff]
    %v75 = vld [vmem:[#allocation2 + $0x170] sm:$0xff]
    %v76 = vld [vmem:[#allocation2 + $0x178] sm:$0xff]
    %v77 = vld [vmem:[#allocation2 + $0x180] sm:$0xff]
    %v78 = vld [vmem:[#allocation2 + $0x188] sm:$0xff]
    %v79 = vld [vmem:[#allocation2 + $0x190] sm:$0xff]
    %v80 = vld [vmem:[#allocation2 + $0x198] sm:$0xff]
    %v81 = vld [vmem:[#allocation2 + $0x1a0] sm:$0xff]
    %v82 = vld [vmem:[#allocation2 + $0x1a8] sm:$0xff]
    %v83 = vld [vmem:[#allocation2 + $0x1b0] sm:$0xff]
    %v84 = vld [vmem:[#allocation2 + $0x1b8] sm:$0xff]
    %v85 = vld [vmem:[#allocation2 + $0x1c0] sm:$0xff]
    %v86 = vld [vmem:[#allocation2 + $0x1c8] sm:$0xff]
    %v87 = vld [vmem:[#allocation2 + $0x1d0] sm:$0xff]
    %v88 = vld [vmem:[#allocation2 + $0x1d8] sm:$0xff]
    %v89 = vld [vmem:[#allocation2 + $0x1e0] sm:$0xff]
    %v90 = vld [vmem:[#allocation2 + $0x1e8] sm:$0xff]
    %v91 = vld [vmem:[#allocation2 + $0x1f0] sm:$0xff]
    %v92 = vld [vmem:[#allocation2 + $0x1f8] sm:$0xff]
    %v93 = vld [vmem:[#allocation2 + $0x200] sm:$0xff]
    %v94 = vld [vmem:[#allocation2 + $0x208] sm:$0xff]
    %v95 = vld [vmem:[#allocation2 + $0x210] sm:$0xff]
    %v96 = vld [vmem:[#allocation2 + $0x218] sm:$0xff]
    %v97 = vld [vmem:[#allocation2 + $0x220] sm:$0xff]
    %v98 = vld [vmem:[#allocation2 + $0x228] sm:$0xff]
    %v99 = vld [vmem:[#allocation2 + $0x230] sm:$0xff]
    %v100 = vld [vmem:[#allocation2 + $0x238] sm:$0xff]
    %v101 = vld [vmem:[#allocation2 + $0x240] sm:$0xff]
    %v102 = vld [vmem:[#allocation2 + $0x248] sm:$0xff]
    %v103 = vld [vmem:[#allocation2 + $0x250] sm:$0xff]
    %v104 = vld [vmem:[#allocation2 + $0x258] sm:$0xff]
    %v105 = vld [vmem:[#allocation2 + $0x260] sm:$0xff]
    %v106 = vld [vmem:[#allocation2 + $0x268] sm:$0xff]
    %v107 = vld [vmem:[#allocation2 + $0x270] sm:$0xff]
    %v108 = vld [vmem:[#allocation2 + $0x278] sm:$0xff]
    %v109 = vld [vmem:[#allocation2 + $0x280] sm:$0xff]
    %v110 = vld [vmem:[#allocation2 + $0x288] sm:$0xff]
    %v111 = vld [vmem:[#allocation2 + $0x290] sm:$0xff]
    %v112 = vld [vmem:[#allocation2 + $0x298] sm:$0xff]
    %v113 = vld [vmem:[#allocation2 + $0x2a0] sm:$0xff]
    %v114 = vld [vmem:[#allocation2 + $0x2a8] sm:$0xff]
    %v115 = vld [vmem:[#allocation2 + $0x2b0] sm:$0xff]
    %v116 = vld [vmem:[#allocation2 + $0x2b8] sm:$0xff]
    %v117 = vld [vmem:[#allocation2 + $0x2c0] sm:$0xff]
    %v118 = vld [vmem:[#allocation2 + $0x2c8] sm:$0xff]
    %v119 = vld [vmem:[#allocation2 + $0x2d0] sm:$0xff]
    %v120 = vld [vmem:[#allocation2 + $0x2d8] sm:$0xff]
    %v121 = vld [vmem:[#allocation2 + $0x2e0] sm:$0xff]
    %v122 = vld [vmem:[#allocation2 + $0x2e8] sm:$0xff]
    %v123 = vld [vmem:[#allocation2 + $0x2f0] sm:$0xff]
    %v124 = vld [vmem:[#allocation2 + $0x2f8] sm:$0xff]
    %v125 = vld [vmem:[#allocation2 + $0x300] sm:$0xff]
    %v126 = vld [vmem:[#allocation2 + $0x308] sm:$0xff]
    %v127 = vld [vmem:[#allocation2 + $0x310] sm:$0xff]
    %v128 = vld [vmem:[#allocation2 + $0x318] sm:$0xff]
    %v129 = vld [vmem:[#allocation2 + $0x320] sm:$0xff]
    %v130 = vld [vmem:[#allocation2 + $0x328] sm:$0xff]
    %v131 = vld [vmem:[#allocation2 + $0x330] sm:$0xff]
    %v132 = vld [vmem:[#allocation2 + $0x338] sm:$0xff]
    %v133 = vld [vmem:[#allocation2 + $0x340] sm:$0xff]
    %v134 = vld [vmem:[#allocation2 + $0x348] sm:$0xff]
    %v135 = vld [vmem:[#allocation2 + $0x350] sm:$0xff]
    %v136 = vld [vmem:[#allocation2 + $0x358] sm:$0xff]
    %v137 = vld [vmem:[#allocation2 + $0x360] sm:$0xff]
    %v138 = vld [vmem:[#allocation2 + $0x368] sm:$0xff]
    %v139 = vld [vmem:[#allocation2 + $0x370] sm:$0xff]
    %v140 = vld [vmem:[#allocation2 + $0x378] sm:$0xff]
    %v141 = vld [vmem:[#allocation2 + $0x380] sm:$0xff]
    %v142 = vld [vmem:[#allocation2 + $0x388] sm:$0xff]
    %v143 = vld [vmem:[#allocation2 + $0x390] sm:$0xff]
    %v144 = vld [vmem:[#allocation2 + $0x398] sm:$0xff]
    %v145 = vld [vmem:[#allocation2 + $0x3a0] sm:$0xff]
    %v146 = vld [vmem:[#allocation2 + $0x3a8] sm:$0xff]
    %v147 = vld [vmem:[#allocation2 + $0x3b0] sm:$0xff]
    %v148 = vld [vmem:[#allocation2 + $0x3b8] sm:$0xff]
    %v149 = vld [vmem:[#allocation2 + $0x3c0] sm:$0xff]
    %v150 = vld [vmem:[#allocation2 + $0x3c8] sm:$0xff]
    %v151 = vld [vmem:[#allocation2 + $0x3d0] sm:$0xff]
    %v152 = vld [vmem:[#allocation2 + $0x3d8] sm:$0xff]
    %v153 = vld [vmem:[#allocation2 + $0x3e0] sm:$0xff]
    %v154 = vld [vmem:[#allocation2 + $0x3e8] sm:$0xff]
    %v155 = vld [vmem:[#allocation2 + $0x3f0] sm:$0xff]
    %v156 = vld [vmem:[#allocation2 + $0x3f8] sm:$0xff]
    %v157 = vld [vmem:[#allocation2 + $0x400] sm:$0xff]
    %v158 = vld [vmem:[#allocation2 + $0x408] sm:$0xff]
    %v159 = vld [vmem:[#allocation2 + $0x410] sm:$0xff]
    %v160 = vld [vmem:[#allocation2 + $0x418] sm:$0xff]
    %v161 = vld [vmem:[#allocation2 + $0x420] sm:$0xff]
    %v162 = vld [vmem:[#allocation2 + $0x428] sm:$0xff]
    %v163 = vld [vmem:[#allocation2 + $0x430] sm:$0xff]
    %v164 = vld [vmem:[#allocation2 + $0x438] sm:$0xff]
    %v165 = vld [vmem:[#allocation2 + $0x440] sm:$0xff]
    %v166 = vld [vmem:[#allocation2 + $0x448] sm:$0xff]
    %v167 = vld [vmem:[#allocation2 + $0x450] sm:$0xff]
    %v168 = vld [vmem:[#allocation2 + $0x458] sm:$0xff]
    %v169 = vld [vmem:[#allocation2 + $0x460] sm:$0xff]
    %v170 = vld [vmem:[#allocation2 + $0x468] sm:$0xff]
    %v171 = vld [vmem:[#allocation2 + $0x470] sm:$0xff]
    %v172 = vld [vmem:[#allocation2 + $0x478] sm:$0xff]
    %v173 = vld [vmem:[#allocation2 + $0x480] sm:$0xff]
    %v174 = vld [vmem:[#allocation2 + $0x488] sm:$0xff]
    %v175 = vld [vmem:[#allocation2 + $0x490] sm:$0xff]
    %v176 = vld [vmem:[#allocation2 + $0x498] sm:$0xff]
    %v177 = vld [vmem:[#allocation2 + $0x4a0] sm:$0xff]
    %v178 = vld [vmem:[#allocation2 + $0x4a8] sm:$0xff]
    %v179 = vld [vmem:[#allocation2 + $0x4b0] sm:$0xff]
    %v180 = vld [vmem:[#allocation2 + $0x4b8] sm:$0xff]
    %v181 = vld [vmem:[#allocation2 + $0x4c0] sm:$0xff]
    %v182 = vld [vmem:[#allocation2 + $0x4c8] sm:$0xff]
    %v183 = vld [vmem:[#allocation2 + $0x4d0] sm:$0xff]
    %v184 = vld [vmem:[#allocation2 + $0x4d8] sm:$0xff]
    %v185 = vld [vmem:[#allocation2 + $0x4e0] sm:$0xff]
    %v186 = vld [vmem:[#allocation2 + $0x4e8] sm:$0xff]
    %v187 = vld [vmem:[#allocation2 + $0x4f0] sm:$0xff]
    %v188 = vld [vmem:[#allocation2 + $0x4f8] sm:$0xff]
    %v189 = vld [vmem:[#allocation2 + $0x500] sm:$0xff]
    %v190 = vld [vmem:[#allocation2 + $0x508] sm:$0xff]
    %v191 = vld [vmem:[#allocation2 + $0x510] sm:$0xff]
    %v192 = vld [vmem:[#allocation2 + $0x518] sm:$0xff]
    %v193 = vld [vmem:[#allocation2 + $0x520] sm:$0xff]
    %v194 = vld [vmem:[#allocation2 + $0x528] sm:$0xff]
    %v195 = vld [vmem:[#allocation2 + $0x530] sm:$0xff]
    %v196 = vld [vmem:[#allocation2 + $0x538] sm:$0xff]
    %v197 = vld [vmem:[#allocation2 + $0x540] sm:$0xff]
    %v198 = vld [vmem:[#allocation2 + $0x548] sm:$0xff]
    %v199 = vld [vmem:[#allocation2 + $0x550] sm:$0xff]
    %v200 = vld [vmem:[#allocation2 + $0x558] sm:$0xff]
    %v201 = vld [vmem:[#allocation2 + $0x560] sm:$0xff]
    %v202 = vld [vmem:[#allocation2 + $0x568] sm:$0xff]
    %v203 = vld [vmem:[#allocation2 + $0x570] sm:$0xff]
    %v204 = vld [vmem:[#allocation2 + $0x578] sm:$0xff]
    %v205 = vld [vmem:[#allocation2 + $0x580] sm:$0xff]
    %v206 = vld [vmem:[#allocation2 + $0x588] sm:$0xff]
    %v207 = vld [vmem:[#allocation2 + $0x590] sm:$0xff]
    %v208 = vld [vmem:[#allocation2 + $0x598] sm:$0xff]
    %v209 = vld [vmem:[#allocation2 + $0x5a0] sm:$0xff]
    %v210 = vld [vmem:[#allocation2 + $0x5a8] sm:$0xff]
    %v211 = vld [vmem:[#allocation2 + $0x5b0] sm:$0xff]
    %v212 = vld [vmem:[#allocation2 + $0x5b8] sm:$0xff]
    %v213 = vld [vmem:[#allocation2 + $0x5c0] sm:$0xff]
    %v214 = vld [vmem:[#allocation2 + $0x5c8] sm:$0xff]
    %v215 = vld [vmem:[#allocation2 + $0x5d0] sm:$0xff]
    %v216 = vld [vmem:[#allocation2 + $0x5d8] sm:$0xff]
    %v217 = vld [vmem:[#allocation2 + $0x5e0] sm:$0xff]
    %v218 = vld [vmem:[#allocation2 + $0x5e8] sm:$0xff]
    %v219 = vld [vmem:[#allocation2 + $0x5f0] sm:$0xff]
    %v220 = vld [vmem:[#allocation2 + $0x5f8] sm:$0xff]
    %v221 = vld [vmem:[#allocation2 + $0x600] sm:$0xff]
    %v222 = vld [vmem:[#allocation2 + $0x608] sm:$0xff]
    %v223 = vld [vmem:[#allocation2 + $0x610] sm:$0xff]
    %v224 = vld [vmem:[#allocation2 + $0x618] sm:$0xff]
    %v225 = vld [vmem:[#allocation2 + $0x620] sm:$0xff]
    %v226 = vld [vmem:[#allocation2 + $0x628] sm:$0xff]
    %v227 = vld [vmem:[#allocation2 + $0x630] sm:$0xff]
    %v228 = vld [vmem:[#allocation2 + $0x638] sm:$0xff]
    %v229 = vld [vmem:[#allocation2 + $0x640] sm:$0xff]
    %v230 = vld [vmem:[#allocation2 + $0x648] sm:$0xff]
    %v231 = vld [vmem:[#allocation2 + $0x650] sm:$0xff]
    %v232 = vld [vmem:[#allocation2 + $0x658] sm:$0xff]
    %v233 = vld [vmem:[#allocation2 + $0x660] sm:$0xff]
    %v234 = vld [vmem:[#allocation2 + $0x668] sm:$0xff]
    %v235 = vld [vmem:[#allocation2 + $0x670] sm:$0xff]
    %v236 = vld [vmem:[#allocation2 + $0x678] sm:$0xff]
    %v237 = vld [vmem:[#allocation2 + $0x680] sm:$0xff]
    %v238 = vld [vmem:[#allocation2 + $0x688] sm:$0xff]
    %v239 = vld [vmem:[#allocation2 + $0x690] sm:$0xff]
    %v240 = vld [vmem:[#allocation2 + $0x698] sm:$0xff]
    %v241 = vld [vmem:[#allocation2 + $0x6a0] sm:$0xff]
    %v242 = vld [vmem:[#allocation2 + $0x6a8] sm:$0xff]
    %v243 = vld [vmem:[#allocation2 + $0x6b0] sm:$0xff]
    %v244 = vld [vmem:[#allocation2 + $0x6b8] sm:$0xff]
    %v245 = vld [vmem:[#allocation2 + $0x6c0] sm:$0xff]
    %v246 = vld [vmem:[#allocation2 + $0x6c8] sm:$0xff]
    %v247 = vld [vmem:[#allocation2 + $0x6d0] sm:$0xff]
    %v248 = vld [vmem:[#allocation2 + $0x6d8] sm:$0xff]
    %v249 = vld [vmem:[#allocation2 + $0x6e0] sm:$0xff]
    %v250 = vld [vmem:[#allocation2 + $0x6e8] sm:$0xff]
    %v251 = vld [vmem:[#allocation2 + $0x6f0] sm:$0xff]
    %v252 = vld [vmem:[#allocation2 + $0x6f8] sm:$0xff]
    %v253 = vld [vmem:[#allocation2 + $0x700] sm:$0xff]
    %v254 = vld [vmem:[#allocation2 + $0x708] sm:$0xff]
    %v255 = vld [vmem:[#allocation2 + $0x710] sm:$0xff]
    %v256 = vld [vmem:[#allocation2 + $0x718] sm:$0xff]
    %v257 = vld [vmem:[#allocation2 + $0x720] sm:$0xff]
    %v258 = vld [vmem:[#allocation2 + $0x728] sm:$0xff]
    %v259 = vld [vmem:[#allocation2 + $0x730] sm:$0xff]
    %v260 = vld [vmem:[#allocation2 + $0x738] sm:$0xff]
    %v261 = vld [vmem:[#allocation2 + $0x740] sm:$0xff]
    %v262 = vld [vmem:[#allocation2 + $0x748] sm:$0xff]
    %v263 = vld [vmem:[#allocation2 + $0x750] sm:$0xff]
    %v264 = vld [vmem:[#allocation2 + $0x758] sm:$0xff]
    %v265 = vld [vmem:[#allocation2 + $0x760] sm:$0xff]
    %v266 = vld [vmem:[#allocation2 + $0x768] sm:$0xff]
    %v267 = vld [vmem:[#allocation2 + $0x770] sm:$0xff]
    %v268 = vld [vmem:[#allocation2 + $0x778] sm:$0xff]
    %v269 = vld [vmem:[#allocation2 + $0x780] sm:$0xff]
    %v270 = vld [vmem:[#allocation2 + $0x788] sm:$0xff]
    %v271 = vld [vmem:[#allocation2 + $0x790] sm:$0xff]
    %v272 = vld [vmem:[#allocation2 + $0x798] sm:$0xff]
    %v273 = vld [vmem:[#allocation2 + $0x7a0] sm:$0xff]
    %v274 = vld [vmem:[#allocation2 + $0x7a8] sm:$0xff]
    %v275 = vld [vmem:[#allocation2 + $0x7b0] sm:$0xff]
    %v276 = vld [vmem:[#allocation2 + $0x7b8] sm:$0xff]
    %v277 = vld [vmem:[#allocation2 + $0x7c0] sm:$0xff]
    %v278 = vld [vmem:[#allocation2 + $0x7c8] sm:$0xff]
    %v279 = vld [vmem:[#allocation2 + $0x7d0] sm:$0xff]
    %v280 = vld [vmem:[#allocation2 + $0x7d8] sm:$0xff]
    %v281 = vld [vmem:[#allocation2 + $0x7e0] sm:$0xff]
    %v282 = vld [vmem:[#allocation2 + $0x7e8] sm:$0xff]
    %v283 = vld [vmem:[#allocation2 + $0x7f0] sm:$0xff]
    %v284 = vld [vmem:[#allocation2 + $0x7f8] sm:$0xff]
    %285 = vmatpush.msra.mxu0 %v149
    %286 = vmatpush.msra.mxu0 %v141
    %287 = vmatpush.msra.mxu0 %v133
    %288 = vmatpush.msra.mxu0 %v125
    %289 = vmatpush.msra.mxu0 %v117
    %290 = vmatpush.msra.mxu0 %v109
    %291 = vmatpush.msra.mxu0 %v101
    %292 = vmatpush.msra.mxu0 %v93
    %293 = vmatpush.msra.mxu0 %v85
    %294 = vmatpush.msra.mxu0 %v77
    %295 = vmatpush.msra.mxu0 %v69
    %296 = vmatpush.msra.mxu0 %v61
    %297 = vmatpush.msra.mxu0 %v53
    %298 = vmatpush.msra.mxu0 %v45
    %299 = vmatpush.msra.mxu0 %v37
    %300 = vmatpush.msra.mxu0 %v29
    %301 = vmatmul.f32.gmra.mxu0 %v27
    %v302 = vpop.f32.mrf.mxu0
    %v303 = vadd.f32 0.0, %v302
    %304 = vdwg.mxu0
    %305 = vmatpush.msra.mxu0 %v277
    %306 = vmatpush.msra.mxu0 %v269
    %307 = vmatpush.msra.mxu0 %v261
    %308 = vmatpush.msra.mxu0 %v253
    %309 = vmatpush.msra.mxu0 %v245
    %310 = vmatpush.msra.mxu0 %v237
    %311 = vmatpush.msra.mxu0 %v229
    %312 = vmatpush.msra.mxu0 %v221
    %313 = vmatpush.msra.mxu0 %v213
    %314 = vmatpush.msra.mxu0 %v205
    %315 = vmatpush.msra.mxu0 %v197
    %316 = vmatpush.msra.mxu0 %v189
    %317 = vmatpush.msra.mxu0 %v181
    %318 = vmatpush.msra.mxu0 %v173
    %319 = vmatpush.msra.mxu0 %v165
    %320 = vmatpush.msra.mxu0 %v157
    %321 = vmatmul.f32.gmra.mxu0 %v28
    %v322 = vpop.f32.mrf.mxu0
    %v323 = vadd.f32 %v303, %v322
    %324 = vdwg.mxu0
    %325 = vmatpush.msra.mxu0 %v150
    %326 = vmatpush.msra.mxu0 %v142
    %327 = vmatpush.msra.mxu0 %v134
    %328 = vmatpush.msra.mxu0 %v126
    %329 = vmatpush.msra.mxu0 %v118
    %330 = vmatpush.msra.mxu0 %v110
    %331 = vmatpush.msra.mxu0 %v102
    %332 = vmatpush.msra.mxu0 %v94
    %333 = vmatpush.msra.mxu0 %v86
    %334 = vmatpush.msra.mxu0 %v78
    %335 = vmatpush.msra.mxu0 %v70
    %336 = vmatpush.msra.mxu0 %v62
    %337 = vmatpush.msra.mxu0 %v54
    %338 = vmatpush.msra.mxu0 %v46
    %339 = vmatpush.msra.mxu0 %v38
    %340 = vmatpush.msra.mxu0 %v30
    %341 = vmatmul.f32.gmra.mxu0 %v27
    %v342 = vpop.f32.mrf.mxu0
    %v343 = vadd.f32 0.0, %v342
    %344 = vdwg.mxu0
    %345 = vmatpush.msra.mxu0 %v278
    %346 = vmatpush.msra.mxu0 %v270
    %347 = vmatpush.msra.mxu0 %v262
    %348 = vmatpush.msra.mxu0 %v254
    %349 = vmatpush.msra.mxu0 %v246
    %350 = vmatpush.msra.mxu0 %v238
    %351 = vmatpush.msra.mxu0 %v230
    %352 = vmatpush.msra.mxu0 %v222
    %353 = vmatpush.msra.mxu0 %v214
    %354 = vmatpush.msra.mxu0 %v206
    %355 = vmatpush.msra.mxu0 %v198
    %356 = vmatpush.msra.mxu0 %v190
    %357 = vmatpush.msra.mxu0 %v182
    %358 = vmatpush.msra.mxu0 %v174
    %359 = vmatpush.msra.mxu0 %v166
    %360 = vmatpush.msra.mxu0 %v158
    %361 = vmatmul.f32.gmra.mxu0 %v28
    %v362 = vpop.f32.mrf.mxu0
    %v363 = vadd.f32 %v343, %v362
    %364 = vdwg.mxu0
    %365 = vmatpush.msra.mxu0 %v151
    %366 = vmatpush.msra.mxu0 %v143
    %367 = vmatpush.msra.mxu0 %v135
    %368 = vmatpush.msra.mxu0 %v127
    %369 = vmatpush.msra.mxu0 %v119
    %370 = vmatpush.msra.mxu0 %v111
    %371 = vmatpush.msra.mxu0 %v103
    %372 = vmatpush.msra.mxu0 %v95
    %373 = vmatpush.msra.mxu0 %v87
    %374 = vmatpush.msra.mxu0 %v79
    %375 = vmatpush.msra.mxu0 %v71
    %376 = vmatpush.msra.mxu0 %v63
    %377 = vmatpush.msra.mxu0 %v55
    %378 = vmatpush.msra.mxu0 %v47
    %379 = vmatpush.msra.mxu0 %v39
    %380 = vmatpush.msra.mxu0 %v31
    %381 = vmatmul.f32.gmra.mxu0 %v27
    %v382 = vpop.f32.mrf.mxu0
    %v383 = vadd.f32 0.0, %v382
    %384 = vdwg.mxu0
    %385 = vmatpush.msra.mxu0 %v279
    %386 = vmatpush.msra.mxu0 %v271
    %387 = vmatpush.msra.mxu0 %v263
    %388 = vmatpush.msra.mxu0 %v255
    %389 = vmatpush.msra.mxu0 %v247
    %390 = vmatpush.msra.mxu0 %v239
    %391 = vmatpush.msra.mxu0 %v231
    %392 = vmatpush.msra.mxu0 %v223
    %393 = vmatpush.msra.mxu0 %v215
    %394 = vmatpush.msra.mxu0 %v207
    %395 = vmatpush.msra.mxu0 %v199
    %396 = vmatpush.msra.mxu0 %v191
    %397 = vmatpush.msra.mxu0 %v183
    %398 = vmatpush.msra.mxu0 %v175
    %399 = vmatpush.msra.mxu0 %v167
    %400 = vmatpush.msra.mxu0 %v159
    %401 = vmatmul.f32.gmra.mxu0 %v28
    %v402 = vpop.f32.mrf.mxu0
    %v403 = vadd.f32 %v383, %v402
    %404 = vdwg.mxu0
    %405 = vmatpush.msra.mxu0 %v152
    %406 = vmatpush.msra.mxu0 %v144
    %407 = vmatpush.msra.mxu0 %v136
    %408 = vmatpush.msra.mxu0 %v128
    %409 = vmatpush.msra.mxu0 %v120
    %410 = vmatpush.msra.mxu0 %v112
    %411 = vmatpush.msra.mxu0 %v104
    %412 = vmatpush.msra.mxu0 %v96
    %413 = vmatpush.msra.mxu0 %v88
    %414 = vmatpush.msra.mxu0 %v80
    %415 = vmatpush.msra.mxu0 %v72
    %416 = vmatpush.msra.mxu0 %v64
    %417 = vmatpush.msra.mxu0 %v56
    %418 = vmatpush.msra.mxu0 %v48
    %419 = vmatpush.msra.mxu0 %v40
    %420 = vmatpush.msra.mxu0 %v32
    %421 = vmatmul.f32.gmra.mxu0 %v27
    %v422 = vpop.f32.mrf.mxu0
    %v423 = vadd.f32 0.0, %v422
    %424 = vdwg.mxu0
    %425 = vmatpush.msra.mxu0 %v280
    %426 = vmatpush.msra.mxu0 %v272
    %427 = vmatpush.msra.mxu0 %v264
    %428 = vmatpush.msra.mxu0 %v256
    %429 = vmatpush.msra.mxu0 %v248
    %430 = vmatpush.msra.mxu0 %v240
    %431 = vmatpush.msra.mxu0 %v232
    %432 = vmatpush.msra.mxu0 %v224
    %433 = vmatpush.msra.mxu0 %v216
    %434 = vmatpush.msra.mxu0 %v208
    %435 = vmatpush.msra.mxu0 %v200
    %436 = vmatpush.msra.mxu0 %v192
    %437 = vmatpush.msra.mxu0 %v184
    %438 = vmatpush.msra.mxu0 %v176
    %439 = vmatpush.msra.mxu0 %v168
    %440 = vmatpush.msra.mxu0 %v160
    %441 = vmatmul.f32.gmra.mxu0 %v28
    %v442 = vpop.f32.mrf.mxu0
    %v443 = vadd.f32 %v423, %v442
    %444 = vdwg.mxu0
    %445 = vmatpush.msra.mxu0 %v153
    %446 = vmatpush.msra.mxu0 %v145
    %447 = vmatpush.msra.mxu0 %v137
    %448 = vmatpush.msra.mxu0 %v129
    %449 = vmatpush.msra.mxu0 %v121
    %450 = vmatpush.msra.mxu0 %v113
    %451 = vmatpush.msra.mxu0 %v105
    %452 = vmatpush.msra.mxu0 %v97
    %453 = vmatpush.msra.mxu0 %v89
    %454 = vmatpush.msra.mxu0 %v81
    %455 = vmatpush.msra.mxu0 %v73
    %456 = vmatpush.msra.mxu0 %v65
    %457 = vmatpush.msra.mxu0 %v57
    %458 = vmatpush.msra.mxu0 %v49
    %459 = vmatpush.msra.mxu0 %v41
    %460 = vmatpush.msra.mxu0 %v33
    %461 = vmatmul.f32.gmra.mxu0 %v27
    %v462 = vpop.f32.mrf.mxu0
    %v463 = vadd.f32 0.0, %v462
    %464 = vdwg.mxu0
    %465 = vmatpush.msra.mxu0 %v281
    %466 = vmatpush.msra.mxu0 %v273
    %467 = vmatpush.msra.mxu0 %v265
    %468 = vmatpush.msra.mxu0 %v257
    %469 = vmatpush.msra.mxu0 %v249
    %470 = vmatpush.msra.mxu0 %v241
    %471 = vmatpush.msra.mxu0 %v233
    %472 = vmatpush.msra.mxu0 %v225
    %473 = vmatpush.msra.mxu0 %v217
    %474 = vmatpush.msra.mxu0 %v209
    %475 = vmatpush.msra.mxu0 %v201
    %476 = vmatpush.msra.mxu0 %v193
    %477 = vmatpush.msra.mxu0 %v185
    %478 = vmatpush.msra.mxu0 %v177
    %479 = vmatpush.msra.mxu0 %v169
    %480 = vmatpush.msra.mxu0 %v161
    %481 = vmatmul.f32.gmra.mxu0 %v28
    %v482 = vpop.f32.mrf.mxu0
    %v483 = vadd.f32 %v463, %v482
    %484 = vdwg.mxu0
    %485 = vmatpush.msra.mxu0 %v154
    %486 = vmatpush.msra.mxu0 %v146
    %487 = vmatpush.msra.mxu0 %v138
    %488 = vmatpush.msra.mxu0 %v130
    %489 = vmatpush.msra.mxu0 %v122
    %490 = vmatpush.msra.mxu0 %v114
    %491 = vmatpush.msra.mxu0 %v106
    %492 = vmatpush.msra.mxu0 %v98
    %493 = vmatpush.msra.mxu0 %v90
    %494 = vmatpush.msra.mxu0 %v82
    %495 = vmatpush.msra.mxu0 %v74
    %496 = vmatpush.msra.mxu0 %v66
    %497 = vmatpush.msra.mxu0 %v58
    %498 = vmatpush.msra.mxu0 %v50
    %499 = vmatpush.msra.mxu0 %v42
    %500 = vmatpush.msra.mxu0 %v34
    %501 = vmatmul.f32.gmra.mxu0 %v27
    %v502 = vpop.f32.mrf.mxu0
    %v503 = vadd.f32 0.0, %v502
    %504 = vdwg.mxu0
    %505 = vmatpush.msra.mxu0 %v282
    %506 = vmatpush.msra.mxu0 %v274
    %507 = vmatpush.msra.mxu0 %v266
    %508 = vmatpush.msra.mxu0 %v258
    %509 = vmatpush.msra.mxu0 %v250
    %510 = vmatpush.msra.mxu0 %v242
    %511 = vmatpush.msra.mxu0 %v234
    %512 = vmatpush.msra.mxu0 %v226
    %513 = vmatpush.msra.mxu0 %v218
    %514 = vmatpush.msra.mxu0 %v210
    %515 = vmatpush.msra.mxu0 %v202
    %516 = vmatpush.msra.mxu0 %v194
    %517 = vmatpush.msra.mxu0 %v186
    %518 = vmatpush.msra.mxu0 %v178
    %519 = vmatpush.msra.mxu0 %v170
    %520 = vmatpush.msra.mxu0 %v162
    %521 = vmatmul.f32.gmra.mxu0 %v28
    %v522 = vpop.f32.mrf.mxu0
    %v523 = vadd.f32 %v503, %v522
    %524 = vdwg.mxu0
    %525 = vmatpush.msra.mxu0 %v155
    %526 = vmatpush.msra.mxu0 %v147
    %527 = vmatpush.msra.mxu0 %v139
    %528 = vmatpush.msra.mxu0 %v131
    %529 = vmatpush.msra.mxu0 %v123
    %530 = vmatpush.msra.mxu0 %v115
    %531 = vmatpush.msra.mxu0 %v107
    %532 = vmatpush.msra.mxu0 %v99
    %533 = vmatpush.msra.mxu0 %v91
    %534 = vmatpush.msra.mxu0 %v83
    %535 = vmatpush.msra.mxu0 %v75
    %536 = vmatpush.msra.mxu0 %v67
    %537 = vmatpush.msra.mxu0 %v59
    %538 = vmatpush.msra.mxu0 %v51
    %539 = vmatpush.msra.mxu0 %v43
    %540 = vmatpush.msra.mxu0 %v35
    %541 = vmatmul.f32.gmra.mxu0 %v27
    %v542 = vpop.f32.mrf.mxu0
    %v543 = vadd.f32 0.0, %v542
    %544 = vdwg.mxu0
    %545 = vmatpush.msra.mxu0 %v283
    %546 = vmatpush.msra.mxu0 %v275
    %547 = vmatpush.msra.mxu0 %v267
    %548 = vmatpush.msra.mxu0 %v259
    %549 = vmatpush.msra.mxu0 %v251
    %550 = vmatpush.msra.mxu0 %v243
    %551 = vmatpush.msra.mxu0 %v235
    %552 = vmatpush.msra.mxu0 %v227
    %553 = vmatpush.msra.mxu0 %v219
    %554 = vmatpush.msra.mxu0 %v211
    %555 = vmatpush.msra.mxu0 %v203
    %556 = vmatpush.msra.mxu0 %v195
    %557 = vmatpush.msra.mxu0 %v187
    %558 = vmatpush.msra.mxu0 %v179
    %559 = vmatpush.msra.mxu0 %v171
    %560 = vmatpush.msra.mxu0 %v163
    %561 = vmatmul.f32.gmra.mxu0 %v28
    %v562 = vpop.f32.mrf.mxu0
    %v563 = vadd.f32 %v543, %v562
    %564 = vdwg.mxu0
    %565 = vmatpush.msra.mxu0 %v156
    %566 = vmatpush.msra.mxu0 %v148
    %567 = vmatpush.msra.mxu0 %v140
    %568 = vmatpush.msra.mxu0 %v132
    %569 = vmatpush.msra.mxu0 %v124
    %570 = vmatpush.msra.mxu0 %v116
    %571 = vmatpush.msra.mxu0 %v108
    %572 = vmatpush.msra.mxu0 %v100
    %573 = vmatpush.msra.mxu0 %v92
    %574 = vmatpush.msra.mxu0 %v84
    %575 = vmatpush.msra.mxu0 %v76
    %576 = vmatpush.msra.mxu0 %v68
    %577 = vmatpush.msra.mxu0 %v60
    %578 = vmatpush.msra.mxu0 %v52
    %579 = vmatpush.msra.mxu0 %v44
    %580 = vmatpush.msra.mxu0 %v36
    %581 = vmatmul.f32.gmra.mxu0 %v27
    %v582 = vpop.f32.mrf.mxu0
    %v583 = vadd.f32 0.0, %v582
    %584 = vdwg.mxu0
    %585 = vmatpush.msra.mxu0 %v284
    %586 = vmatpush.msra.mxu0 %v276
    %587 = vmatpush.msra.mxu0 %v268
    %588 = vmatpush.msra.mxu0 %v260
    %589 = vmatpush.msra.mxu0 %v252
    %590 = vmatpush.msra.mxu0 %v244
    %591 = vmatpush.msra.mxu0 %v236
    %592 = vmatpush.msra.mxu0 %v228
    %593 = vmatpush.msra.mxu0 %v220
    %594 = vmatpush.msra.mxu0 %v212
    %595 = vmatpush.msra.mxu0 %v204
    %596 = vmatpush.msra.mxu0 %v196
    %597 = vmatpush.msra.mxu0 %v188
    %598 = vmatpush.msra.mxu0 %v180
    %599 = vmatpush.msra.mxu0 %v172
    %600 = vmatpush.msra.mxu0 %v164
    %601 = vmatmul.f32.gmra.mxu0 %v28
    %v602 = vpop.f32.mrf.mxu0
    %v603 = vadd.f32 %v583, %v602
    %604 = vdwg.mxu0
    %605 = vst [vmem:[%s2] sm:$0xff] %v323
    %606 = vst [vmem:[%s2 + $0x8] sm:$0xff] %v363
    %607 = vst [vmem:[%s2 + $0x10] sm:$0xff] %v403
    %608 = vst [vmem:[%s2 + $0x18] sm:$0xff] %v443
    %609 = vst [vmem:[%s2 + $0x20] sm:$0xff] %v483
    %610 = vst [vmem:[%s2 + $0x28] sm:$0xff] %v523
    %611 = vst [vmem:[%s2 + $0x30] sm:$0xff] %v563
    %612 = vst [vmem:[%s2 + $0x38] sm:$0xff] %v603
    // Predicated region
    $region14: #{upsample_block.1} parent=1 // pred_check
      _
    $region15: #{upsample_block.1} parent=1 // pred_check_branch
      %614 = sbr.rel (0) target = $region17
    $region16: #{upsample_block.1} parent=1 // pred_region
      _
    $region17: #{upsample_block.1} parent=1 // pred_fallthru
      _
    // Predicated region
    $region18: #{upsample_block.1} parent=1 // pred_check
      _
    $region19: #{upsample_block.1} parent=1 // pred_check_branch
      %616 = sbr.rel (0) target = $region21
    $region20: #{upsample_block.1} parent=1 // pred_region
      _
    $region21: #{upsample_block.1} parent=1 // pred_fallthru
      _
    %617 = vsyncpa [#allocation3], 1

</llo_original>
